<compile_context>
chip_gen: v5e
topology: v5e:2x2
jax: 0.10.0
libtpu: 0.0.40
codegen_flags: <defaults>
</compile_context>

<pallas_src>
import functools
import math
import numpy as np
import jax
import jax.numpy as jnp
from jax.experimental import pallas as pl
from jax.experimental.pallas import tpu as pltpu


def cosine_beta_schedule(T, s=0.008):
    steps = T + 1
    x = np.linspace(0, T, steps, dtype=np.float32)
    alphas_cumprod = np.cos((x / T + s) / (1 + s) * math.pi * 0.5) ** 2
    alphas_cumprod = alphas_cumprod / alphas_cumprod[0]
    betas = 1.0 - alphas_cumprod[1:] / alphas_cumprod[:-1]
    return np.clip(betas, 0.0001, 0.9999).astype(np.float32)


def _diffusion_loss_kernel(sc_ref, w_ref, xn_ref, out_ref, *, B, C, P):
    """Whole-batch diffusion training loss in a single invocation.

    sc_ref : SMEM (4*B,)        flat per-sample [sqrt_ab[t], sqrt_1m_ab[t],
                                 log_betas[t], t/T]
    w_ref  : SMEM (2*C*(C+2),)  flat synthetic model weights
                                 (noise head rows, then logvar head rows)
    xn_ref : VMEM (2, B*C, P)   stacked [x_0; noise]; rows = (sample, channel)
    out_ref: VMEM (8, 128)      lane/sublane-dense slab, scalar loss broadcast
    """
    NW = C + 2  # weights per output row: C x_t channels + t/T + bias
    acc = jnp.zeros((1, P), dtype=jnp.float32)

    for b in range(B):                      # static unroll (tiny B)
        sa = sc_ref[4 * b + 0]              # sqrt(alphas_bar[t_b])
        s1 = sc_ref[4 * b + 1]              # sqrt(1 - alphas_bar[t_b])
        lb = sc_ref[4 * b + 2]              # log(betas[t_b]) == true_logvar
        tn = sc_ref[4 * b + 3]              # t_b / T

        # q(x_t | x_0) rows and noise rows, each (1, P).  Pure VPU FMAs with
        # SMEM scalars broadcast for free.
        nz_rows = []
        xt_rows = []
        for c in range(C):
            r = b * C + c
            x0 = xn_ref[0, r:r + 1, :]
            nz = xn_ref[1, r:r + 1, :]
            nz_rows.append(nz)
            xt_rows.append(sa * x0 + s1 * nz)

        # Synthetic per-pixel linear model: 2 heads (pred_noise, pred_logvar),
        # each output row is C FMAs + affine time/bias term — no MXU.
        for o in range(C):
            bn = o * NW                     # noise-head weight row base
            bl = C * NW + o * NW            # logvar-head weight row base
            pn = w_ref[bn + C] * tn + w_ref[bn + C + 1]
            plv = w_ref[bl + C] * tn + w_ref[bl + C + 1]
            for c in range(C):
                pn = pn + w_ref[bn + c] * xt_rows[c]
                plv = plv + w_ref[bl + c] * xt_rows[c]

            # Fused per-element MSE + KL contribution (exp runs on the EUP).
            # TODO(synk): a real model head may need pred_logvar clamping to
            # guard exp overflow; the reference PyTorch module does not clamp.
            d = pn - nz_rows[o]
            acc = acc + d * d + 0.5 * ((lb - plv) + jnp.exp(plv - lb) - 1.0)

    # mean_b(mse_b + kl_b) == sum over all (b, c, p) / (B*C*P):
    # single cross-lane reduction + one constant multiply.
    loss = jnp.sum(acc) * jnp.float32(1.0 / (B * C * P))
    out_ref[...] = jnp.full((8, 128), loss, dtype=jnp.float32)


def diffusion_trainer_loss(x_0, t, noise, params, schedules, T):
    sqrt_ab, sqrt_1mab, log_betas = schedules
    B, C, H, W = x_0.shape
    P = H * W

    # One stacked VMEM input -> one DMA for both x_0 and noise.
    xn = jnp.stack(
        [x_0.reshape(B * C, P), noise.reshape(B * C, P)], axis=0
    ).astype(jnp.float32)

    # extract(...) equivalents: per-sample scalars, flattened 1-D for SMEM
    # (1-D SMEM avoids the 2-D (8,128)-word padding blow-up).
    sc = jnp.stack(
        [sqrt_ab[t], sqrt_1mab[t], log_betas[t], t.astype(jnp.float32) / T],
        axis=1,
    ).reshape(-1).astype(jnp.float32)                    # (4*B,)
    w = params.reshape(-1).astype(jnp.float32)           # (2*C*(C+2),)

    kernel = functools.partial(_diffusion_loss_kernel, B=B, C=C, P=P)
    out = pl.pallas_call(
        kernel,
        out_shape=jax.ShapeDtypeStruct((8, 128), jnp.float32),
        in_specs=[
            pl.BlockSpec(memory_space=pltpu.MemorySpace.SMEM),   # schedule scalars
            pl.BlockSpec(memory_space=pltpu.MemorySpace.SMEM),   # model weights
            pl.BlockSpec(memory_space=pltpu.MemorySpace.VMEM),   # stacked x0/noise
        ],
        out_specs=pl.BlockSpec(memory_space=pltpu.MemorySpace.VMEM),
    )(sc, w, xn)

    # Batch mean is already folded into the in-kernel reduction.
    return out[0, 0]


def reference_loss(x_0, t, noise, params, schedules, T):
    """Pure-JAX reference with identical semantics for verification."""
    sqrt_ab, sqrt_1mab, log_betas = schedules
    B, C, H, W = x_0.shape
    a = sqrt_ab[t].reshape(B, 1, 1, 1)
    s = sqrt_1mab[t].reshape(B, 1, 1, 1)
    x_t = a * x_0 + s * noise
    tn = t.astype(jnp.float32) / T
    xf = x_t.reshape(B, C, H * W)

    def head(w):
        return (jnp.einsum('oc,bcp->bop', w[:, 0:3], xf)
                + w[None, :, 3, None] * tn[:, None, None]
                + w[None, :, 4, None])

    pred_noise = head(params[0]).reshape(B, C, H, W)
    pred_logvar = head(params[1]).reshape(B, C, H, W)

    mse = jnp.mean((pred_noise - noise) ** 2, axis=(1, 2, 3))
    tl = log_betas[t].reshape(B, 1, 1, 1)
    kl = 0.5 * (tl - pred_logvar + jnp.exp(pred_logvar - tl) - 1.0)
    kl = jnp.mean(kl, axis=(1, 2, 3))
    return jnp.mean(mse + kl)


if __name__ == "__main__":
    T = 1000
    B, C, H, W = 2, 3, 16, 16   # C=3 matches the module's split(3, dim=1)

    key = jax.random.PRNGKey(0)
    kx, kt, kn, kp = jax.random.split(key, 4)

    # torch.randint / torch.randn_like equivalents (RNG stays host-side JAX).
    x_0 = jax.random.normal(kx, (B, C, H, W), dtype=jnp.float32)
    t = jax.random.randint(kt, (B,), 0, T)
    noise = jax.random.normal(kn, (B, C, H, W), dtype=jnp.float32)

    # Deterministic synthetic model weights: 2 heads (noise, logvar),
    # each a (C, C+2) linear map over [x_t channels, t/T, 1].
    params = 0.05 * jax.random.normal(kp, (2, C, C + 2), dtype=jnp.float32)

    # Registered buffers from __init__.
    betas = jnp.asarray(cosine_beta_schedule(T))
    alphas = 1.0 - betas
    alphas_bar = jnp.cumprod(alphas)
    schedules = (
        jnp.sqrt(alphas_bar),
        jnp.sqrt(1.0 - alphas_bar),
        jnp.log(betas),
    )

    loss = diffusion_trainer_loss(x_0, t, noise, params, schedules, T)
    loss = jax.block_until_ready(loss)

    ref = reference_loss(x_0, t, noise, params, schedules, T)
    assert np.allclose(np.asarray(loss), np.asarray(ref), rtol=1e-4, atol=1e-5), (
        float(loss), float(ref))
    print("KERNEL_OK")
</pallas_src>

<mosaic_0001>
module attributes {stable_mosaic.version = 11 : i64} {
  func.func @_diffusion_loss_kernel(%arg0: memref<8xf32, #tpu.memory_space<smem>>, %arg1: memref<30xf32, #tpu.memory_space<smem>>, %arg2: memref<2x6x256xf32, #tpu.memory_space<vmem>>, %arg3: memref<8x128xf32, #tpu.memory_space<vmem>>) attributes {dimension_semantics = [], scalar_prefetch = 0 : i64, scratch_operands = 0 : i64, tpu.core_type = #tpu.core_type<tc>} {
    %cst = arith.constant 0.000000e+00 : f32
    %0 = vector.broadcast %cst : f32 to vector<1x256xf32>
    %c0 = arith.constant 0 : index
    %1 = memref.load %arg0[%c0] : memref<8xf32, #tpu.memory_space<smem>>
    %c1 = arith.constant 1 : index
    %2 = memref.load %arg0[%c1] : memref<8xf32, #tpu.memory_space<smem>>
    %c2 = arith.constant 2 : index
    %3 = memref.load %arg0[%c2] : memref<8xf32, #tpu.memory_space<smem>>
    %c3 = arith.constant 3 : index
    %4 = memref.load %arg0[%c3] : memref<8xf32, #tpu.memory_space<smem>>
    %c0_0 = arith.constant 0 : index
    %c0_1 = arith.constant 0 : index
    %c0_2 = arith.constant 0 : index
    %5 = vector.load %arg2[%c0_0, %c0_1, %c0_2] : memref<2x6x256xf32, #tpu.memory_space<vmem>>, vector<1x1x256xf32>
    %6 = vector.shape_cast %5 : vector<1x1x256xf32> to vector<1x256xf32>
    %c1_3 = arith.constant 1 : index
    %c0_4 = arith.constant 0 : index
    %c0_5 = arith.constant 0 : index
    %7 = vector.load %arg2[%c1_3, %c0_4, %c0_5] : memref<2x6x256xf32, #tpu.memory_space<vmem>>, vector<1x1x256xf32>
    %8 = vector.shape_cast %7 : vector<1x1x256xf32> to vector<1x256xf32>
    %9 = vector.broadcast %1 : f32 to vector<1x256xf32>
    %10 = arith.mulf %9, %6 : vector<1x256xf32>
    %11 = vector.broadcast %2 : f32 to vector<1x256xf32>
    %12 = arith.mulf %11, %8 : vector<1x256xf32>
    %13 = arith.addf %10, %12 : vector<1x256xf32>
    %c0_6 = arith.constant 0 : index
    %c1_7 = arith.constant 1 : index
    %c0_8 = arith.constant 0 : index
    %14 = vector.load %arg2[%c0_6, %c1_7, %c0_8] : memref<2x6x256xf32, #tpu.memory_space<vmem>>, vector<1x1x256xf32>
    %15 = vector.shape_cast %14 : vector<1x1x256xf32> to vector<1x256xf32>
    %c1_9 = arith.constant 1 : index
    %c1_10 = arith.constant 1 : index
    %c0_11 = arith.constant 0 : index
    %16 = vector.load %arg2[%c1_9, %c1_10, %c0_11] : memref<2x6x256xf32, #tpu.memory_space<vmem>>, vector<1x1x256xf32>
    %17 = vector.shape_cast %16 : vector<1x1x256xf32> to vector<1x256xf32>
    %18 = vector.broadcast %1 : f32 to vector<1x256xf32>
    %19 = arith.mulf %18, %15 : vector<1x256xf32>
    %20 = vector.broadcast %2 : f32 to vector<1x256xf32>
    %21 = arith.mulf %20, %17 : vector<1x256xf32>
    %22 = arith.addf %19, %21 : vector<1x256xf32>
    %c0_12 = arith.constant 0 : index
    %c2_13 = arith.constant 2 : index
    %c0_14 = arith.constant 0 : index
    %23 = vector.load %arg2[%c0_12, %c2_13, %c0_14] : memref<2x6x256xf32, #tpu.memory_space<vmem>>, vector<1x1x256xf32>
    %24 = vector.shape_cast %23 : vector<1x1x256xf32> to vector<1x256xf32>
    %c1_15 = arith.constant 1 : index
    %c2_16 = arith.constant 2 : index
    %c0_17 = arith.constant 0 : index
    %25 = vector.load %arg2[%c1_15, %c2_16, %c0_17] : memref<2x6x256xf32, #tpu.memory_space<vmem>>, vector<1x1x256xf32>
    %26 = vector.shape_cast %25 : vector<1x1x256xf32> to vector<1x256xf32>
    %27 = vector.broadcast %1 : f32 to vector<1x256xf32>
    %28 = arith.mulf %27, %24 : vector<1x256xf32>
    %29 = vector.broadcast %2 : f32 to vector<1x256xf32>
    %30 = arith.mulf %29, %26 : vector<1x256xf32>
    %31 = arith.addf %28, %30 : vector<1x256xf32>
    %c3_18 = arith.constant 3 : index
    %32 = memref.load %arg1[%c3_18] : memref<30xf32, #tpu.memory_space<smem>>
    %33 = arith.mulf %32, %4 : f32
    %c4 = arith.constant 4 : index
    %34 = memref.load %arg1[%c4] : memref<30xf32, #tpu.memory_space<smem>>
    %35 = arith.addf %33, %34 : f32
    %c18 = arith.constant 18 : index
    %36 = memref.load %arg1[%c18] : memref<30xf32, #tpu.memory_space<smem>>
    %37 = arith.mulf %36, %4 : f32
    %c19 = arith.constant 19 : index
    %38 = memref.load %arg1[%c19] : memref<30xf32, #tpu.memory_space<smem>>
    %39 = arith.addf %37, %38 : f32
    %c0_19 = arith.constant 0 : index
    %40 = memref.load %arg1[%c0_19] : memref<30xf32, #tpu.memory_space<smem>>
    %41 = vector.broadcast %40 : f32 to vector<1x256xf32>
    %42 = arith.mulf %41, %13 : vector<1x256xf32>
    %43 = vector.broadcast %35 : f32 to vector<1x256xf32>
    %44 = arith.addf %43, %42 : vector<1x256xf32>
    %c15 = arith.constant 15 : index
    %45 = memref.load %arg1[%c15] : memref<30xf32, #tpu.memory_space<smem>>
    %46 = vector.broadcast %45 : f32 to vector<1x256xf32>
    %47 = arith.mulf %46, %13 : vector<1x256xf32>
    %48 = vector.broadcast %39 : f32 to vector<1x256xf32>
    %49 = arith.addf %48, %47 : vector<1x256xf32>
    %c1_20 = arith.constant 1 : index
    %50 = memref.load %arg1[%c1_20] : memref<30xf32, #tpu.memory_space<smem>>
    %51 = vector.broadcast %50 : f32 to vector<1x256xf32>
    %52 = arith.mulf %51, %22 : vector<1x256xf32>
    %53 = arith.addf %44, %52 : vector<1x256xf32>
    %c16 = arith.constant 16 : index
    %54 = memref.load %arg1[%c16] : memref<30xf32, #tpu.memory_space<smem>>
    %55 = vector.broadcast %54 : f32 to vector<1x256xf32>
    %56 = arith.mulf %55, %22 : vector<1x256xf32>
    %57 = arith.addf %49, %56 : vector<1x256xf32>
    %c2_21 = arith.constant 2 : index
    %58 = memref.load %arg1[%c2_21] : memref<30xf32, #tpu.memory_space<smem>>
    %59 = vector.broadcast %58 : f32 to vector<1x256xf32>
    %60 = arith.mulf %59, %31 : vector<1x256xf32>
    %61 = arith.addf %53, %60 : vector<1x256xf32>
    %c17 = arith.constant 17 : index
    %62 = memref.load %arg1[%c17] : memref<30xf32, #tpu.memory_space<smem>>
    %63 = vector.broadcast %62 : f32 to vector<1x256xf32>
    %64 = arith.mulf %63, %31 : vector<1x256xf32>
    %65 = arith.addf %57, %64 : vector<1x256xf32>
    %66 = arith.subf %61, %8 : vector<1x256xf32>
    %67 = arith.mulf %66, %66 : vector<1x256xf32>
    %68 = arith.addf %0, %67 : vector<1x256xf32>
    %69 = vector.broadcast %3 : f32 to vector<1x256xf32>
    %70 = arith.subf %69, %65 : vector<1x256xf32>
    %71 = vector.broadcast %3 : f32 to vector<1x256xf32>
    %72 = arith.subf %65, %71 : vector<1x256xf32>
    %73 = math.exp %72 : vector<1x256xf32>
    %74 = arith.addf %70, %73 : vector<1x256xf32>
    %cst_22 = arith.constant 1.000000e+00 : f32
    %75 = vector.broadcast %cst_22 : f32 to vector<1x256xf32>
    %76 = arith.subf %74, %75 : vector<1x256xf32>
    %cst_23 = arith.constant 5.000000e-01 : f32
    %77 = vector.broadcast %cst_23 : f32 to vector<1x256xf32>
    %78 = arith.mulf %77, %76 : vector<1x256xf32>
    %79 = arith.addf %68, %78 : vector<1x256xf32>
    %c8 = arith.constant 8 : index
    %80 = memref.load %arg1[%c8] : memref<30xf32, #tpu.memory_space<smem>>
    %81 = arith.mulf %80, %4 : f32
    %c9 = arith.constant 9 : index
    %82 = memref.load %arg1[%c9] : memref<30xf32, #tpu.memory_space<smem>>
    %83 = arith.addf %81, %82 : f32
    %c23 = arith.constant 23 : index
    %84 = memref.load %arg1[%c23] : memref<30xf32, #tpu.memory_space<smem>>
    %85 = arith.mulf %84, %4 : f32
    %c24 = arith.constant 24 : index
    %86 = memref.load %arg1[%c24] : memref<30xf32, #tpu.memory_space<smem>>
    %87 = arith.addf %85, %86 : f32
    %c5 = arith.constant 5 : index
    %88 = memref.load %arg1[%c5] : memref<30xf32, #tpu.memory_space<smem>>
    %89 = vector.broadcast %88 : f32 to vector<1x256xf32>
    %90 = arith.mulf %89, %13 : vector<1x256xf32>
    %91 = vector.broadcast %83 : f32 to vector<1x256xf32>
    %92 = arith.addf %91, %90 : vector<1x256xf32>
    %c20 = arith.constant 20 : index
    %93 = memref.load %arg1[%c20] : memref<30xf32, #tpu.memory_space<smem>>
    %94 = vector.broadcast %93 : f32 to vector<1x256xf32>
    %95 = arith.mulf %94, %13 : vector<1x256xf32>
    %96 = vector.broadcast %87 : f32 to vector<1x256xf32>
    %97 = arith.addf %96, %95 : vector<1x256xf32>
    %c6 = arith.constant 6 : index
    %98 = memref.load %arg1[%c6] : memref<30xf32, #tpu.memory_space<smem>>
    %99 = vector.broadcast %98 : f32 to vector<1x256xf32>
    %100 = arith.mulf %99, %22 : vector<1x256xf32>
    %101 = arith.addf %92, %100 : vector<1x256xf32>
    %c21 = arith.constant 21 : index
    %102 = memref.load %arg1[%c21] : memref<30xf32, #tpu.memory_space<smem>>
    %103 = vector.broadcast %102 : f32 to vector<1x256xf32>
    %104 = arith.mulf %103, %22 : vector<1x256xf32>
    %105 = arith.addf %97, %104 : vector<1x256xf32>
    %c7 = arith.constant 7 : index
    %106 = memref.load %arg1[%c7] : memref<30xf32, #tpu.memory_space<smem>>
    %107 = vector.broadcast %106 : f32 to vector<1x256xf32>
    %108 = arith.mulf %107, %31 : vector<1x256xf32>
    %109 = arith.addf %101, %108 : vector<1x256xf32>
    %c22 = arith.constant 22 : index
    %110 = memref.load %arg1[%c22] : memref<30xf32, #tpu.memory_space<smem>>
    %111 = vector.broadcast %110 : f32 to vector<1x256xf32>
    %112 = arith.mulf %111, %31 : vector<1x256xf32>
    %113 = arith.addf %105, %112 : vector<1x256xf32>
    %114 = arith.subf %109, %17 : vector<1x256xf32>
    %115 = arith.mulf %114, %114 : vector<1x256xf32>
    %116 = arith.addf %79, %115 : vector<1x256xf32>
    %117 = vector.broadcast %3 : f32 to vector<1x256xf32>
    %118 = arith.subf %117, %113 : vector<1x256xf32>
    %119 = vector.broadcast %3 : f32 to vector<1x256xf32>
    %120 = arith.subf %113, %119 : vector<1x256xf32>
    %121 = math.exp %120 : vector<1x256xf32>
    %122 = arith.addf %118, %121 : vector<1x256xf32>
    %cst_24 = arith.constant 1.000000e+00 : f32
    %123 = vector.broadcast %cst_24 : f32 to vector<1x256xf32>
    %124 = arith.subf %122, %123 : vector<1x256xf32>
    %cst_25 = arith.constant 5.000000e-01 : f32
    %125 = vector.broadcast %cst_25 : f32 to vector<1x256xf32>
    %126 = arith.mulf %125, %124 : vector<1x256xf32>
    %127 = arith.addf %116, %126 : vector<1x256xf32>
    %c13 = arith.constant 13 : index
    %128 = memref.load %arg1[%c13] : memref<30xf32, #tpu.memory_space<smem>>
    %129 = arith.mulf %128, %4 : f32
    %c14 = arith.constant 14 : index
    %130 = memref.load %arg1[%c14] : memref<30xf32, #tpu.memory_space<smem>>
    %131 = arith.addf %129, %130 : f32
    %c28 = arith.constant 28 : index
    %132 = memref.load %arg1[%c28] : memref<30xf32, #tpu.memory_space<smem>>
    %133 = arith.mulf %132, %4 : f32
    %c29 = arith.constant 29 : index
    %134 = memref.load %arg1[%c29] : memref<30xf32, #tpu.memory_space<smem>>
    %135 = arith.addf %133, %134 : f32
    %c10 = arith.constant 10 : index
    %136 = memref.load %arg1[%c10] : memref<30xf32, #tpu.memory_space<smem>>
    %137 = vector.broadcast %136 : f32 to vector<1x256xf32>
    %138 = arith.mulf %137, %13 : vector<1x256xf32>
    %139 = vector.broadcast %131 : f32 to vector<1x256xf32>
    %140 = arith.addf %139, %138 : vector<1x256xf32>
    %c25 = arith.constant 25 : index
    %141 = memref.load %arg1[%c25] : memref<30xf32, #tpu.memory_space<smem>>
    %142 = vector.broadcast %141 : f32 to vector<1x256xf32>
    %143 = arith.mulf %142, %13 : vector<1x256xf32>
    %144 = vector.broadcast %135 : f32 to vector<1x256xf32>
    %145 = arith.addf %144, %143 : vector<1x256xf32>
    %c11 = arith.constant 11 : index
    %146 = memref.load %arg1[%c11] : memref<30xf32, #tpu.memory_space<smem>>
    %147 = vector.broadcast %146 : f32 to vector<1x256xf32>
    %148 = arith.mulf %147, %22 : vector<1x256xf32>
    %149 = arith.addf %140, %148 : vector<1x256xf32>
    %c26 = arith.constant 26 : index
    %150 = memref.load %arg1[%c26] : memref<30xf32, #tpu.memory_space<smem>>
    %151 = vector.broadcast %150 : f32 to vector<1x256xf32>
    %152 = arith.mulf %151, %22 : vector<1x256xf32>
    %153 = arith.addf %145, %152 : vector<1x256xf32>
    %c12 = arith.constant 12 : index
    %154 = memref.load %arg1[%c12] : memref<30xf32, #tpu.memory_space<smem>>
    %155 = vector.broadcast %154 : f32 to vector<1x256xf32>
    %156 = arith.mulf %155, %31 : vector<1x256xf32>
    %157 = arith.addf %149, %156 : vector<1x256xf32>
    %c27 = arith.constant 27 : index
    %158 = memref.load %arg1[%c27] : memref<30xf32, #tpu.memory_space<smem>>
    %159 = vector.broadcast %158 : f32 to vector<1x256xf32>
    %160 = arith.mulf %159, %31 : vector<1x256xf32>
    %161 = arith.addf %153, %160 : vector<1x256xf32>
    %162 = arith.subf %157, %26 : vector<1x256xf32>
    %163 = arith.mulf %162, %162 : vector<1x256xf32>
    %164 = arith.addf %127, %163 : vector<1x256xf32>
    %165 = vector.broadcast %3 : f32 to vector<1x256xf32>
    %166 = arith.subf %165, %161 : vector<1x256xf32>
    %167 = vector.broadcast %3 : f32 to vector<1x256xf32>
    %168 = arith.subf %161, %167 : vector<1x256xf32>
    %169 = math.exp %168 : vector<1x256xf32>
    %170 = arith.addf %166, %169 : vector<1x256xf32>
    %cst_26 = arith.constant 1.000000e+00 : f32
    %171 = vector.broadcast %cst_26 : f32 to vector<1x256xf32>
    %172 = arith.subf %170, %171 : vector<1x256xf32>
    %cst_27 = arith.constant 5.000000e-01 : f32
    %173 = vector.broadcast %cst_27 : f32 to vector<1x256xf32>
    %174 = arith.mulf %173, %172 : vector<1x256xf32>
    %175 = arith.addf %164, %174 : vector<1x256xf32>
    %c4_28 = arith.constant 4 : index
    %176 = memref.load %arg0[%c4_28] : memref<8xf32, #tpu.memory_space<smem>>
    %c5_29 = arith.constant 5 : index
    %177 = memref.load %arg0[%c5_29] : memref<8xf32, #tpu.memory_space<smem>>
    %c6_30 = arith.constant 6 : index
    %178 = memref.load %arg0[%c6_30] : memref<8xf32, #tpu.memory_space<smem>>
    %c7_31 = arith.constant 7 : index
    %179 = memref.load %arg0[%c7_31] : memref<8xf32, #tpu.memory_space<smem>>
    %c0_32 = arith.constant 0 : index
    %c3_33 = arith.constant 3 : index
    %c0_34 = arith.constant 0 : index
    %180 = vector.load %arg2[%c0_32, %c3_33, %c0_34] : memref<2x6x256xf32, #tpu.memory_space<vmem>>, vector<1x1x256xf32>
    %181 = vector.shape_cast %180 : vector<1x1x256xf32> to vector<1x256xf32>
    %c1_35 = arith.constant 1 : index
    %c3_36 = arith.constant 3 : index
    %c0_37 = arith.constant 0 : index
    %182 = vector.load %arg2[%c1_35, %c3_36, %c0_37] : memref<2x6x256xf32, #tpu.memory_space<vmem>>, vector<1x1x256xf32>
    %183 = vector.shape_cast %182 : vector<1x1x256xf32> to vector<1x256xf32>
    %184 = vector.broadcast %176 : f32 to vector<1x256xf32>
    %185 = arith.mulf %184, %181 : vector<1x256xf32>
    %186 = vector.broadcast %177 : f32 to vector<1x256xf32>
    %187 = arith.mulf %186, %183 : vector<1x256xf32>
    %188 = arith.addf %185, %187 : vector<1x256xf32>
    %c0_38 = arith.constant 0 : index
    %c4_39 = arith.constant 4 : index
    %c0_40 = arith.constant 0 : index
    %189 = vector.load %arg2[%c0_38, %c4_39, %c0_40] : memref<2x6x256xf32, #tpu.memory_space<vmem>>, vector<1x1x256xf32>
    %190 = vector.shape_cast %189 : vector<1x1x256xf32> to vector<1x256xf32>
    %c1_41 = arith.constant 1 : index
    %c4_42 = arith.constant 4 : index
    %c0_43 = arith.constant 0 : index
    %191 = vector.load %arg2[%c1_41, %c4_42, %c0_43] : memref<2x6x256xf32, #tpu.memory_space<vmem>>, vector<1x1x256xf32>
    %192 = vector.shape_cast %191 : vector<1x1x256xf32> to vector<1x256xf32>
    %193 = vector.broadcast %176 : f32 to vector<1x256xf32>
    %194 = arith.mulf %193, %190 : vector<1x256xf32>
    %195 = vector.broadcast %177 : f32 to vector<1x256xf32>
    %196 = arith.mulf %195, %192 : vector<1x256xf32>
    %197 = arith.addf %194, %196 : vector<1x256xf32>
    %c0_44 = arith.constant 0 : index
    %c5_45 = arith.constant 5 : index
    %c0_46 = arith.constant 0 : index
    %198 = vector.load %arg2[%c0_44, %c5_45, %c0_46] : memref<2x6x256xf32, #tpu.memory_space<vmem>>, vector<1x1x256xf32>
    %199 = vector.shape_cast %198 : vector<1x1x256xf32> to vector<1x256xf32>
    %c1_47 = arith.constant 1 : index
    %c5_48 = arith.constant 5 : index
    %c0_49 = arith.constant 0 : index
    %200 = vector.load %arg2[%c1_47, %c5_48, %c0_49] : memref<2x6x256xf32, #tpu.memory_space<vmem>>, vector<1x1x256xf32>
    %201 = vector.shape_cast %200 : vector<1x1x256xf32> to vector<1x256xf32>
    %202 = vector.broadcast %176 : f32 to vector<1x256xf32>
    %203 = arith.mulf %202, %199 : vector<1x256xf32>
    %204 = vector.broadcast %177 : f32 to vector<1x256xf32>
    %205 = arith.mulf %204, %201 : vector<1x256xf32>
    %206 = arith.addf %203, %205 : vector<1x256xf32>
    %c3_50 = arith.constant 3 : index
    %207 = memref.load %arg1[%c3_50] : memref<30xf32, #tpu.memory_space<smem>>
    %208 = arith.mulf %207, %179 : f32
    %c4_51 = arith.constant 4 : index
    %209 = memref.load %arg1[%c4_51] : memref<30xf32, #tpu.memory_space<smem>>
    %210 = arith.addf %208, %209 : f32
    %c18_52 = arith.constant 18 : index
    %211 = memref.load %arg1[%c18_52] : memref<30xf32, #tpu.memory_space<smem>>
    %212 = arith.mulf %211, %179 : f32
    %c19_53 = arith.constant 19 : index
    %213 = memref.load %arg1[%c19_53] : memref<30xf32, #tpu.memory_space<smem>>
    %214 = arith.addf %212, %213 : f32
    %c0_54 = arith.constant 0 : index
    %215 = memref.load %arg1[%c0_54] : memref<30xf32, #tpu.memory_space<smem>>
    %216 = vector.broadcast %215 : f32 to vector<1x256xf32>
    %217 = arith.mulf %216, %188 : vector<1x256xf32>
    %218 = vector.broadcast %210 : f32 to vector<1x256xf32>
    %219 = arith.addf %218, %217 : vector<1x256xf32>
    %c15_55 = arith.constant 15 : index
    %220 = memref.load %arg1[%c15_55] : memref<30xf32, #tpu.memory_space<smem>>
    %221 = vector.broadcast %220 : f32 to vector<1x256xf32>
    %222 = arith.mulf %221, %188 : vector<1x256xf32>
    %223 = vector.broadcast %214 : f32 to vector<1x256xf32>
    %224 = arith.addf %223, %222 : vector<1x256xf32>
    %c1_56 = arith.constant 1 : index
    %225 = memref.load %arg1[%c1_56] : memref<30xf32, #tpu.memory_space<smem>>
    %226 = vector.broadcast %225 : f32 to vector<1x256xf32>
    %227 = arith.mulf %226, %197 : vector<1x256xf32>
    %228 = arith.addf %219, %227 : vector<1x256xf32>
    %c16_57 = arith.constant 16 : index
    %229 = memref.load %arg1[%c16_57] : memref<30xf32, #tpu.memory_space<smem>>
    %230 = vector.broadcast %229 : f32 to vector<1x256xf32>
    %231 = arith.mulf %230, %197 : vector<1x256xf32>
    %232 = arith.addf %224, %231 : vector<1x256xf32>
    %c2_58 = arith.constant 2 : index
    %233 = memref.load %arg1[%c2_58] : memref<30xf32, #tpu.memory_space<smem>>
    %234 = vector.broadcast %233 : f32 to vector<1x256xf32>
    %235 = arith.mulf %234, %206 : vector<1x256xf32>
    %236 = arith.addf %228, %235 : vector<1x256xf32>
    %c17_59 = arith.constant 17 : index
    %237 = memref.load %arg1[%c17_59] : memref<30xf32, #tpu.memory_space<smem>>
    %238 = vector.broadcast %237 : f32 to vector<1x256xf32>
    %239 = arith.mulf %238, %206 : vector<1x256xf32>
    %240 = arith.addf %232, %239 : vector<1x256xf32>
    %241 = arith.subf %236, %183 : vector<1x256xf32>
    %242 = arith.mulf %241, %241 : vector<1x256xf32>
    %243 = arith.addf %175, %242 : vector<1x256xf32>
    %244 = vector.broadcast %178 : f32 to vector<1x256xf32>
    %245 = arith.subf %244, %240 : vector<1x256xf32>
    %246 = vector.broadcast %178 : f32 to vector<1x256xf32>
    %247 = arith.subf %240, %246 : vector<1x256xf32>
    %248 = math.exp %247 : vector<1x256xf32>
    %249 = arith.addf %245, %248 : vector<1x256xf32>
    %cst_60 = arith.constant 1.000000e+00 : f32
    %250 = vector.broadcast %cst_60 : f32 to vector<1x256xf32>
    %251 = arith.subf %249, %250 : vector<1x256xf32>
    %cst_61 = arith.constant 5.000000e-01 : f32
    %252 = vector.broadcast %cst_61 : f32 to vector<1x256xf32>
    %253 = arith.mulf %252, %251 : vector<1x256xf32>
    %254 = arith.addf %243, %253 : vector<1x256xf32>
    %c8_62 = arith.constant 8 : index
    %255 = memref.load %arg1[%c8_62] : memref<30xf32, #tpu.memory_space<smem>>
    %256 = arith.mulf %255, %179 : f32
    %c9_63 = arith.constant 9 : index
    %257 = memref.load %arg1[%c9_63] : memref<30xf32, #tpu.memory_space<smem>>
    %258 = arith.addf %256, %257 : f32
    %c23_64 = arith.constant 23 : index
    %259 = memref.load %arg1[%c23_64] : memref<30xf32, #tpu.memory_space<smem>>
    %260 = arith.mulf %259, %179 : f32
    %c24_65 = arith.constant 24 : index
    %261 = memref.load %arg1[%c24_65] : memref<30xf32, #tpu.memory_space<smem>>
    %262 = arith.addf %260, %261 : f32
    %c5_66 = arith.constant 5 : index
    %263 = memref.load %arg1[%c5_66] : memref<30xf32, #tpu.memory_space<smem>>
    %264 = vector.broadcast %263 : f32 to vector<1x256xf32>
    %265 = arith.mulf %264, %188 : vector<1x256xf32>
    %266 = vector.broadcast %258 : f32 to vector<1x256xf32>
    %267 = arith.addf %266, %265 : vector<1x256xf32>
    %c20_67 = arith.constant 20 : index
    %268 = memref.load %arg1[%c20_67] : memref<30xf32, #tpu.memory_space<smem>>
    %269 = vector.broadcast %268 : f32 to vector<1x256xf32>
    %270 = arith.mulf %269, %188 : vector<1x256xf32>
    %271 = vector.broadcast %262 : f32 to vector<1x256xf32>
    %272 = arith.addf %271, %270 : vector<1x256xf32>
    %c6_68 = arith.constant 6 : index
    %273 = memref.load %arg1[%c6_68] : memref<30xf32, #tpu.memory_space<smem>>
    %274 = vector.broadcast %273 : f32 to vector<1x256xf32>
    %275 = arith.mulf %274, %197 : vector<1x256xf32>
    %276 = arith.addf %267, %275 : vector<1x256xf32>
    %c21_69 = arith.constant 21 : index
    %277 = memref.load %arg1[%c21_69] : memref<30xf32, #tpu.memory_space<smem>>
    %278 = vector.broadcast %277 : f32 to vector<1x256xf32>
    %279 = arith.mulf %278, %197 : vector<1x256xf32>
    %280 = arith.addf %272, %279 : vector<1x256xf32>
    %c7_70 = arith.constant 7 : index
    %281 = memref.load %arg1[%c7_70] : memref<30xf32, #tpu.memory_space<smem>>
    %282 = vector.broadcast %281 : f32 to vector<1x256xf32>
    %283 = arith.mulf %282, %206 : vector<1x256xf32>
    %284 = arith.addf %276, %283 : vector<1x256xf32>
    %c22_71 = arith.constant 22 : index
    %285 = memref.load %arg1[%c22_71] : memref<30xf32, #tpu.memory_space<smem>>
    %286 = vector.broadcast %285 : f32 to vector<1x256xf32>
    %287 = arith.mulf %286, %206 : vector<1x256xf32>
    %288 = arith.addf %280, %287 : vector<1x256xf32>
    %289 = arith.subf %284, %192 : vector<1x256xf32>
    %290 = arith.mulf %289, %289 : vector<1x256xf32>
    %291 = arith.addf %254, %290 : vector<1x256xf32>
    %292 = vector.broadcast %178 : f32 to vector<1x256xf32>
    %293 = arith.subf %292, %288 : vector<1x256xf32>
    %294 = vector.broadcast %178 : f32 to vector<1x256xf32>
    %295 = arith.subf %288, %294 : vector<1x256xf32>
    %296 = math.exp %295 : vector<1x256xf32>
    %297 = arith.addf %293, %296 : vector<1x256xf32>
    %cst_72 = arith.constant 1.000000e+00 : f32
    %298 = vector.broadcast %cst_72 : f32 to vector<1x256xf32>
    %299 = arith.subf %297, %298 : vector<1x256xf32>
    %cst_73 = arith.constant 5.000000e-01 : f32
    %300 = vector.broadcast %cst_73 : f32 to vector<1x256xf32>
    %301 = arith.mulf %300, %299 : vector<1x256xf32>
    %302 = arith.addf %291, %301 : vector<1x256xf32>
    %c13_74 = arith.constant 13 : index
    %303 = memref.load %arg1[%c13_74] : memref<30xf32, #tpu.memory_space<smem>>
    %304 = arith.mulf %303, %179 : f32
    %c14_75 = arith.constant 14 : index
    %305 = memref.load %arg1[%c14_75] : memref<30xf32, #tpu.memory_space<smem>>
    %306 = arith.addf %304, %305 : f32
    %c28_76 = arith.constant 28 : index
    %307 = memref.load %arg1[%c28_76] : memref<30xf32, #tpu.memory_space<smem>>
    %308 = arith.mulf %307, %179 : f32
    %c29_77 = arith.constant 29 : index
    %309 = memref.load %arg1[%c29_77] : memref<30xf32, #tpu.memory_space<smem>>
    %310 = arith.addf %308, %309 : f32
    %c10_78 = arith.constant 10 : index
    %311 = memref.load %arg1[%c10_78] : memref<30xf32, #tpu.memory_space<smem>>
    %312 = vector.broadcast %311 : f32 to vector<1x256xf32>
    %313 = arith.mulf %312, %188 : vector<1x256xf32>
    %314 = vector.broadcast %306 : f32 to vector<1x256xf32>
    %315 = arith.addf %314, %313 : vector<1x256xf32>
    %c25_79 = arith.constant 25 : index
    %316 = memref.load %arg1[%c25_79] : memref<30xf32, #tpu.memory_space<smem>>
    %317 = vector.broadcast %316 : f32 to vector<1x256xf32>
    %318 = arith.mulf %317, %188 : vector<1x256xf32>
    %319 = vector.broadcast %310 : f32 to vector<1x256xf32>
    %320 = arith.addf %319, %318 : vector<1x256xf32>
    %c11_80 = arith.constant 11 : index
    %321 = memref.load %arg1[%c11_80] : memref<30xf32, #tpu.memory_space<smem>>
    %322 = vector.broadcast %321 : f32 to vector<1x256xf32>
    %323 = arith.mulf %322, %197 : vector<1x256xf32>
    %324 = arith.addf %315, %323 : vector<1x256xf32>
    %c26_81 = arith.constant 26 : index
    %325 = memref.load %arg1[%c26_81] : memref<30xf32, #tpu.memory_space<smem>>
    %326 = vector.broadcast %325 : f32 to vector<1x256xf32>
    %327 = arith.mulf %326, %197 : vector<1x256xf32>
    %328 = arith.addf %320, %327 : vector<1x256xf32>
    %c12_82 = arith.constant 12 : index
    %329 = memref.load %arg1[%c12_82] : memref<30xf32, #tpu.memory_space<smem>>
    %330 = vector.broadcast %329 : f32 to vector<1x256xf32>
    %331 = arith.mulf %330, %206 : vector<1x256xf32>
    %332 = arith.addf %324, %331 : vector<1x256xf32>
    %c27_83 = arith.constant 27 : index
    %333 = memref.load %arg1[%c27_83] : memref<30xf32, #tpu.memory_space<smem>>
    %334 = vector.broadcast %333 : f32 to vector<1x256xf32>
    %335 = arith.mulf %334, %206 : vector<1x256xf32>
    %336 = arith.addf %328, %335 : vector<1x256xf32>
    %337 = arith.subf %332, %201 : vector<1x256xf32>
    %338 = arith.mulf %337, %337 : vector<1x256xf32>
    %339 = arith.addf %302, %338 : vector<1x256xf32>
    %340 = vector.broadcast %178 : f32 to vector<1x256xf32>
    %341 = arith.subf %340, %336 : vector<1x256xf32>
    %342 = vector.broadcast %178 : f32 to vector<1x256xf32>
    %343 = arith.subf %336, %342 : vector<1x256xf32>
    %344 = math.exp %343 : vector<1x256xf32>
    %345 = arith.addf %341, %344 : vector<1x256xf32>
    %cst_84 = arith.constant 1.000000e+00 : f32
    %346 = vector.broadcast %cst_84 : f32 to vector<1x256xf32>
    %347 = arith.subf %345, %346 : vector<1x256xf32>
    %cst_85 = arith.constant 5.000000e-01 : f32
    %348 = vector.broadcast %cst_85 : f32 to vector<1x256xf32>
    %349 = arith.mulf %348, %347 : vector<1x256xf32>
    %350 = arith.addf %339, %349 : vector<1x256xf32>
    %351 = vector.shape_cast %350 : vector<1x256xf32> to vector<1x1x256xf32>
    %cst_86 = arith.constant dense<0.000000e+00> : vector<1xf32>
    %352 = vector.multi_reduction <add>, %351, %cst_86 [1, 2] : vector<1x1x256xf32> to vector<1xf32>
    %353 = vector.shape_cast %352 : vector<1xf32> to vector<1x1x1xf32>
    %354 = vector.extract %353[0, 0, 0] : f32 from vector<1x1x1xf32>
    %cst_87 = arith.constant 6.51041686E-4 : f32
    %355 = arith.mulf %354, %cst_87 : f32
    %356 = vector.broadcast %355 : f32 to vector<8x128xf32>
    %c0_88 = arith.constant 0 : index
    %c0_89 = arith.constant 0 : index
    %357 = vector.load %arg3[%c0_88, %c0_89] : memref<8x128xf32, #tpu.memory_space<vmem>>, vector<8x128xf32>
    tpu.vector_store %arg3[%c0_88, %c0_89], %356 {strides = array<i32>} : memref<8x128xf32, #tpu.memory_space<vmem>>, vector<8x128xf32>,
    return
  }
}

</mosaic_0001>

<llo_original>
// kernel: tpu_custom_call.1
$region0: #{tpu_custom_call.1}
  #allocation0 [shape = 'u32[]', space=smem, size = 0x4, offset = 0x4, fixed_abs, tag = 'smem constant byte address 0x4 - core index']
  #allocation1 [shape = 'u32[72,128]{1,0:T(1,128)}', space=vmem, size = 0x9000, scoped, tag = 'internal scratch']
  %s0 = inlined_call_operand.vmem [shape: f32[8], index: 0, kind: input, shape index: {}]
  %s1 = inlined_call_operand.vmem [shape: f32[30], index: 1, kind: input, shape index: {}]
  %s2 = inlined_call_operand.vmem [shape: f32[2,6,256], index: 2, kind: input, shape index: {}]
  %s3 = inlined_call_operand.hbm [shape: f32[8,128], index: 3, kind: output, shape index: {}]
  %s4 = sld [smem:[#allocation0]]
  $region30: #{tpu_custom_call.1} parent=0
    _
  %s6 = ssub.s32 1, %s4
  %s7 = scalar_select 0, %s6, %s4
  $region1: #{tpu_custom_call.1} parent=0
    #allocation2 [shape = 'u8[512]{0}', space=smem, size = 0x200, scoped, tag = 'input window, operand 0, single buffered']
    #allocation3 [shape = 's32[1]{0}', space=sflag, size = 0x4, scoped, tag = 'scoped memory for tpu_custom_call.1']
    #allocation4 [shape = 's32[1]{0}', space=sflag, size = 0x4, scoped, tag = 'scoped memory for tpu_custom_call.1']
    #allocation5 [shape = 'u8[512]{0}', space=smem, size = 0x200, scoped, tag = 'input window, operand 1, single buffered']
    #allocation6 [shape = 's32[1]{0}', space=sflag, size = 0x4, scoped, tag = 'scoped memory for tpu_custom_call.1']
    #allocation7 [shape = 'u8[4096]{0}', space=vmem, size = 0x1000, scoped, tag = 'output window, operand 0, single buffered']
    %8 = vsyncpa [#allocation4], 0
    %9 = vsyncpa [#allocation6], 0
    %10 = vsyncpa [#allocation3], 0
    // Predicated region
    $region2: #{tpu_custom_call.1} parent=1 // pred_check
      _
    $region3: #{tpu_custom_call.1} parent=1 // pred_check_branch
      %12 = sbr.rel (0) target = $region5
    $region4: #{tpu_custom_call.1} parent=1 // pred_region
      %14 = vsyncadd [#allocation4], 0
      %s16 = sshll.u32 %s0, 4
      %s17 = int_to_ptr.vmem [resolvable:$true] %s16
      %19 = dma.vmem_to_smem %s17, 16, [#allocation2], [#allocation4]
    $region5: #{tpu_custom_call.1} parent=1 // pred_fallthru
      _
    // Predicated region
    $region6: #{tpu_custom_call.1} parent=1 // pred_check
      _
    $region7: #{tpu_custom_call.1} parent=1 // pred_check_branch
      %21 = sbr.rel (0) target = $region9
    $region8: #{tpu_custom_call.1} parent=1 // pred_region
      %23 = vsyncadd [#allocation6], 0
      %s25 = sshll.u32 %s1, 4
      %s26 = int_to_ptr.vmem [resolvable:$true] %s25
      %28 = dma.vmem_to_smem %s26, 16, [#allocation5], [#allocation6]
    $region9: #{tpu_custom_call.1} parent=1 // pred_fallthru
      _
    // Predicated region
    $region10: #{tpu_custom_call.1} parent=1 // pred_check
      _
    $region11: #{tpu_custom_call.1} parent=1 // pred_check_branch
      %30 = sbr.rel (0) target = $region13
    $region12: #{tpu_custom_call.1} parent=1 // pred_region
      _
    $region13: #{tpu_custom_call.1} parent=1 // pred_fallthru
      _
    // Predicated region
    $region14: #{tpu_custom_call.1} parent=1 // pred_check
      _
    $region15: #{tpu_custom_call.1} parent=1 // pred_check_branch
      %32 = sbr.rel (0) target = $region17
    $region16: #{tpu_custom_call.1} parent=1 // pred_region
      %34 = dma.done [#allocation4], 16
    $region17: #{tpu_custom_call.1} parent=1 // pred_fallthru
      _
    // Predicated region
    $region18: #{tpu_custom_call.1} parent=1 // pred_check
      _
    $region19: #{tpu_custom_call.1} parent=1 // pred_check_branch
      %36 = sbr.rel (0) target = $region21
    $region20: #{tpu_custom_call.1} parent=1 // pred_region
      %38 = dma.done [#allocation6], 16
    $region21: #{tpu_custom_call.1} parent=1 // pred_fallthru
      _
    %39 = sfence
    %s40 = sld [smem:[#allocation2]]
    %s41 = sld [smem:[#allocation2 + $0x1]]
    %s42 = sld [smem:[#allocation2 + $0x2]]
    %s43 = sld [smem:[#allocation2 + $0x3]]
    %v44 = vld [vmem:[%s2] ss:$8 sm:$0x3]
    %s45 = scalar_lea.vmem %s2, 16
    %v46 = vld [vmem:[%s45] ss:$8 sm:$0x3]
    %v47 = vstv %s40
    %v48 = vmul.f32 %v47, %v44
    %v49 = vstv %s41
    %v50 = vmul.f32 %v49, %v46
    %v51 = vadd.f32 %v48, %v50
    %s52 = scalar_lea.vmem %s2, 1
    %v53 = vld [vmem:[%s52] ss:$8 sm:$0x3]
    %s54 = scalar_lea.vmem %s45, 1
    %v55 = vld [vmem:[%s54] ss:$8 sm:$0x3]
    %v56 = vmul.f32 %v47, %v53
    %v57 = vmul.f32 %v49, %v55
    %v58 = vadd.f32 %v56, %v57
    %s59 = scalar_lea.vmem %s2, 2
    %v60 = vld [vmem:[%s59] ss:$8 sm:$0x3]
    %s61 = scalar_lea.vmem %s45, 2
    %v62 = vld [vmem:[%s61] ss:$8 sm:$0x3]
    %v63 = vmul.f32 %v47, %v60
    %v64 = vmul.f32 %v49, %v62
    %v65 = vadd.f32 %v63, %v64
    %s66 = sld [smem:[#allocation5 + $0x3]]
    %s67 = smul.f32 %s66, %s43
    %s68 = sld [smem:[#allocation5 + $0x4]]
    %s69 = sadd.f32 %s67, %s68
    %s70 = sld [smem:[#allocation5 + $0x12]]
    %s71 = smul.f32 %s70, %s43
    %s72 = sld [smem:[#allocation5 + $0x13]]
    %s73 = sadd.f32 %s71, %s72
    %s74 = sld [smem:[#allocation5]]
    %v75 = vstv %s74
    %v76 = vmul.f32 %v75, %v51
    %v77 = vstv %s69
    %v78 = vadd.f32 %v77, %v76
    %s79 = sld [smem:[#allocation5 + $0xf]]
    %v80 = vstv %s79
    %v81 = vmul.f32 %v80, %v51
    %v82 = vstv %s73
    %v83 = vadd.f32 %v82, %v81
    %s84 = sld [smem:[#allocation5 + $0x1]]
    %v85 = vstv %s84
    %v86 = vmul.f32 %v85, %v58
    %v87 = vadd.f32 %v78, %v86
    %s88 = sld [smem:[#allocation5 + $0x10]]
    %v89 = vstv %s88
    %v90 = vmul.f32 %v89, %v58
    %v91 = vadd.f32 %v83, %v90
    %s92 = sld [smem:[#allocation5 + $0x2]]
    %v93 = vstv %s92
    %v94 = vmul.f32 %v93, %v65
    %v95 = vadd.f32 %v87, %v94
    %s96 = sld [smem:[#allocation5 + $0x11]]
    %v97 = vstv %s96
    %v98 = vmul.f32 %v97, %v65
    %v99 = vadd.f32 %v91, %v98
    %v100 = vsub.f32 %v95, %v46
    %v101 = vmul.f32 %v100, %v100
    %v102 = vadd.f32 %v101, 0.0
    %v103 = vstv %s42
    %v104 = vsub.f32 %v103, %v99
    %v105 = vsub.f32 %v99, %v103
    %v106 = vmul.f32 %v105, 1.442695
    %v107 = vpow.pop %v106
    %v108 = vadd.f32 %v104, %v107
    %v109 = vsub.f32 %v108, 1.0
    %v110 = vmul.f32 %v109, 0.5
    %v111 = vadd.f32 %v102, %v110
    %s112 = sld [smem:[#allocation5 + $0x8]]
    %s113 = smul.f32 %s112, %s43
    %s114 = sld [smem:[#allocation5 + $0x9]]
    %s115 = sadd.f32 %s113, %s114
    %s116 = sld [smem:[#allocation5 + $0x17]]
    %s117 = smul.f32 %s116, %s43
    %s118 = sld [smem:[#allocation5 + $0x18]]
    %s119 = sadd.f32 %s117, %s118
    %s120 = sld [smem:[#allocation5 + $0x5]]
    %v121 = vstv %s120
    %v122 = vmul.f32 %v121, %v51
    %v123 = vstv %s115
    %v124 = vadd.f32 %v123, %v122
    %s125 = sld [smem:[#allocation5 + $0x14]]
    %v126 = vstv %s125
    %v127 = vmul.f32 %v126, %v51
    %v128 = vstv %s119
    %v129 = vadd.f32 %v128, %v127
    %s130 = sld [smem:[#allocation5 + $0x6]]
    %v131 = vstv %s130
    %v132 = vmul.f32 %v131, %v58
    %v133 = vadd.f32 %v124, %v132
    %s134 = sld [smem:[#allocation5 + $0x15]]
    %v135 = vstv %s134
    %v136 = vmul.f32 %v135, %v58
    %v137 = vadd.f32 %v129, %v136
    %s138 = sld [smem:[#allocation5 + $0x7]]
    %v139 = vstv %s138
    %v140 = vmul.f32 %v139, %v65
    %v141 = vadd.f32 %v133, %v140
    %s142 = sld [smem:[#allocation5 + $0x16]]
    %v143 = vstv %s142
    %v144 = vmul.f32 %v143, %v65
    %v145 = vadd.f32 %v137, %v144
    %v146 = vsub.f32 %v141, %v55
    %v147 = vmul.f32 %v146, %v146
    %v148 = vadd.f32 %v111, %v147
    %v149 = vsub.f32 %v103, %v145
    %v150 = vsub.f32 %v145, %v103
    %v151 = vmul.f32 %v150, 1.442695
    %v152 = vpow.pop %v151
    %v153 = vadd.f32 %v149, %v152
    %v154 = vsub.f32 %v153, 1.0
    %v155 = vmul.f32 %v154, 0.5
    %v156 = vadd.f32 %v148, %v155
    %s157 = sld [smem:[#allocation5 + $0xd]]
    %s158 = smul.f32 %s157, %s43
    %s159 = sld [smem:[#allocation5 + $0xe]]
    %s160 = sadd.f32 %s158, %s159
    %s161 = sld [smem:[#allocation5 + $0x1c]]
    %s162 = smul.f32 %s161, %s43
    %s163 = sld [smem:[#allocation5 + $0x1d]]
    %s164 = sadd.f32 %s162, %s163
    %s165 = sld [smem:[#allocation5 + $0xa]]
    %v166 = vstv %s165
    %v167 = vmul.f32 %v166, %v51
    %v168 = vstv %s160
    %v169 = vadd.f32 %v168, %v167
    %s170 = sld [smem:[#allocation5 + $0x19]]
    %v171 = vstv %s170
    %v172 = vmul.f32 %v171, %v51
    %v173 = vstv %s164
    %v174 = vadd.f32 %v173, %v172
    %s175 = sld [smem:[#allocation5 + $0xb]]
    %v176 = vstv %s175
    %v177 = vmul.f32 %v176, %v58
    %v178 = vadd.f32 %v169, %v177
    %s179 = sld [smem:[#allocation5 + $0x1a]]
    %v180 = vstv %s179
    %v181 = vmul.f32 %v180, %v58
    %v182 = vadd.f32 %v174, %v181
    %s183 = sld [smem:[#allocation5 + $0xc]]
    %v184 = vstv %s183
    %v185 = vmul.f32 %v184, %v65
    %v186 = vadd.f32 %v178, %v185
    %s187 = sld [smem:[#allocation5 + $0x1b]]
    %v188 = vstv %s187
    %v189 = vmul.f32 %v188, %v65
    %v190 = vadd.f32 %v182, %v189
    %v191 = vsub.f32 %v186, %v62
    %v192 = vmul.f32 %v191, %v191
    %v193 = vadd.f32 %v156, %v192
    %v194 = vsub.f32 %v103, %v190
    %v195 = vsub.f32 %v190, %v103
    %v196 = vmul.f32 %v195, 1.442695
    %v197 = vpow.pop %v196
    %v198 = vadd.f32 %v194, %v197
    %v199 = vsub.f32 %v198, 1.0
    %v200 = vmul.f32 %v199, 0.5
    %v201 = vadd.f32 %v193, %v200
    %s202 = sld [smem:[#allocation2 + $0x4]]
    %s203 = sld [smem:[#allocation2 + $0x5]]
    %s204 = sld [smem:[#allocation2 + $0x6]]
    %s205 = sld [smem:[#allocation2 + $0x7]]
    %s206 = scalar_lea.vmem %s2, 3
    %v207 = vld [vmem:[%s206] ss:$8 sm:$0x3]
    %s208 = scalar_lea.vmem %s45, 3
    %v209 = vld [vmem:[%s208] ss:$8 sm:$0x3]
    %v210 = vstv %s202
    %v211 = vmul.f32 %v210, %v207
    %v212 = vstv %s203
    %v213 = vmul.f32 %v212, %v209
    %v214 = vadd.f32 %v211, %v213
    %s215 = scalar_lea.vmem %s2, 4
    %v216 = vld [vmem:[%s215] ss:$8 sm:$0x3]
    %s217 = scalar_lea.vmem %s45, 4
    %v218 = vld [vmem:[%s217] ss:$8 sm:$0x3]
    %v219 = vmul.f32 %v210, %v216
    %v220 = vmul.f32 %v212, %v218
    %v221 = vadd.f32 %v219, %v220
    %s222 = scalar_lea.vmem %s2, 5
    %v223 = vld [vmem:[%s222] ss:$8 sm:$0x3]
    %s224 = scalar_lea.vmem %s45, 5
    %v225 = vld [vmem:[%s224] ss:$8 sm:$0x3]
    %v226 = vmul.f32 %v210, %v223
    %v227 = vmul.f32 %v212, %v225
    %v228 = vadd.f32 %v226, %v227
    %s229 = smul.f32 %s66, %s205
    %s230 = sadd.f32 %s229, %s68
    %s231 = smul.f32 %s70, %s205
    %s232 = sadd.f32 %s231, %s72
    %v233 = vmul.f32 %v75, %v214
    %v234 = vstv %s230
    %v235 = vadd.f32 %v234, %v233
    %v236 = vmul.f32 %v80, %v214
    %v237 = vstv %s232
    %v238 = vadd.f32 %v237, %v236
    %v239 = vmul.f32 %v85, %v221
    %v240 = vadd.f32 %v235, %v239
    %v241 = vmul.f32 %v89, %v221
    %v242 = vadd.f32 %v238, %v241
    %v243 = vmul.f32 %v93, %v228
    %v244 = vadd.f32 %v240, %v243
    %v245 = vmul.f32 %v97, %v228
    %v246 = vadd.f32 %v242, %v245
    %v247 = vsub.f32 %v244, %v209
    %v248 = vmul.f32 %v247, %v247
    %v249 = vadd.f32 %v201, %v248
    %v250 = vstv %s204
    %v251 = vsub.f32 %v250, %v246
    %v252 = vsub.f32 %v246, %v250
    %v253 = vmul.f32 %v252, 1.442695
    %v254 = vpow.pop %v253
    %v255 = vadd.f32 %v251, %v254
    %v256 = vsub.f32 %v255, 1.0
    %v257 = vmul.f32 %v256, 0.5
    %v258 = vadd.f32 %v249, %v257
    %s259 = smul.f32 %s112, %s205
    %s260 = sadd.f32 %s259, %s114
    %s261 = smul.f32 %s116, %s205
    %s262 = sadd.f32 %s261, %s118
    %v263 = vmul.f32 %v121, %v214
    %v264 = vstv %s260
    %v265 = vadd.f32 %v264, %v263
    %v266 = vmul.f32 %v126, %v214
    %v267 = vstv %s262
    %v268 = vadd.f32 %v267, %v266
    %v269 = vmul.f32 %v131, %v221
    %v270 = vadd.f32 %v265, %v269
    %v271 = vmul.f32 %v135, %v221
    %v272 = vadd.f32 %v268, %v271
    %v273 = vmul.f32 %v139, %v228
    %v274 = vadd.f32 %v270, %v273
    %v275 = vmul.f32 %v143, %v228
    %v276 = vadd.f32 %v272, %v275
    %v277 = vsub.f32 %v274, %v218
    %v278 = vmul.f32 %v277, %v277
    %v279 = vadd.f32 %v258, %v278
    %v280 = vsub.f32 %v250, %v276
    %v281 = vsub.f32 %v276, %v250
    %v282 = vmul.f32 %v281, 1.442695
    %v283 = vpow.pop %v282
    %v284 = vadd.f32 %v280, %v283
    %v285 = vsub.f32 %v284, 1.0
    %v286 = vmul.f32 %v285, 0.5
    %v287 = vadd.f32 %v279, %v286
    %s288 = smul.f32 %s157, %s205
    %s289 = sadd.f32 %s288, %s159
    %s290 = smul.f32 %s161, %s205
    %s291 = sadd.f32 %s290, %s163
    %v292 = vmul.f32 %v166, %v214
    %v293 = vstv %s289
    %v294 = vadd.f32 %v293, %v292
    %v295 = vmul.f32 %v171, %v214
    %v296 = vstv %s291
    %v297 = vadd.f32 %v296, %v295
    %v298 = vmul.f32 %v176, %v221
    %v299 = vadd.f32 %v294, %v298
    %v300 = vmul.f32 %v180, %v221
    %v301 = vadd.f32 %v297, %v300
    %v302 = vmul.f32 %v184, %v228
    %v303 = vadd.f32 %v299, %v302
    %v304 = vmul.f32 %v188, %v228
    %v305 = vadd.f32 %v301, %v304
    %v306 = vsub.f32 %v303, %v225
    %v307 = vmul.f32 %v306, %v306
    %v308 = vadd.f32 %v287, %v307
    %v309 = vsub.f32 %v250, %v305
    %v310 = vsub.f32 %v305, %v250
    %v311 = vmul.f32 %v310, 1.442695
    %v312 = vpow.pop %v311
    %v313 = vadd.f32 %v309, %v312
    %v314 = vsub.f32 %v313, 1.0
    %v315 = vmul.f32 %v314, 0.5
    %v316 = vadd.f32 %v308, %v315
    %v318 = vperm.slane %v316, 0
    %v319 = vperm.slane %v316, 1
    %vm322 = vcmask 1040384
    %v323 = vsel %vm322, %v318, 0.0
    %v324 = vsel %vm322, %v319, 0.0
    %v325 = vadd.f32 %v323, %v324
    %326 = vadd.xlane.f32.xlu0 %v325
    %v327 = vpop.xlane.xlu0 %326
    %v328 = vrot.slane %v327, 4
    %v329 = vadd.f32 %v327, %v328
    %v330 = vrot.slane %v329, 2
    %v331 = vadd.f32 %v329, %v330
    %v332 = vrot.slane %v331, 1
    %v333 = vadd.f32 %v331, %v332
    %s334 = vtos %v333
    %s335 = smul.f32 %s334, 0.0006510417
    %v336 = vstv %s335
    %337 = vst [vmem:[#allocation7] sm:$0xff] %v336
    // Predicated region
    $region22: #{tpu_custom_call.1} parent=1 // pred_check
      _
    $region23: #{tpu_custom_call.1} parent=1 // pred_check_branch
      %339 = sbr.rel (0) target = $region25
    $region24: #{tpu_custom_call.1} parent=1 // pred_region
      %341 = vsyncadd [#allocation3], 0
      %s343 = sshll.u32 [#allocation7], 4
      %s344 = int_to_ptr.vmem [resolvable:$true] %s343
      %s345 = sshll.u32 %s3, 4
      %s346 = int_to_ptr.hbm [resolvable:$true] %s345
      %348 = dma.vmem_to_hbm [thread:$0]  %s344, 128, %s346, [#allocation3]
    $region25: #{tpu_custom_call.1} parent=1 // pred_fallthru
      _
    // Predicated region
    $region26: #{tpu_custom_call.1} parent=1 // pred_check
      _
    $region27: #{tpu_custom_call.1} parent=1 // pred_check_branch
      %350 = sbr.rel (0) target = $region29
    $region28: #{tpu_custom_call.1} parent=1 // pred_region
      %352 = dma.done [#allocation3], 128
    $region29: #{tpu_custom_call.1} parent=1 // pred_fallthru
      _
    %353 = vsyncpa [#allocation3], 1
    %354 = vsyncpa [#allocation4], 1
    %355 = vsyncpa [#allocation6], 1

</llo_original>
